<compile_context>
chip_gen: v5e
topology: v5e:2x2
jax: 0.10.0
libtpu: 0.0.40
codegen_flags: <defaults>
</compile_context>

<pallas_src>
import functools

import jax
import jax.numpy as jnp
from jax.experimental import pallas as pl
from jax.experimental.pallas import tpu as pltpu


def _round_up(x, m):
    return ((x + m - 1) // m) * m


def _mlp_kernel(use_domain, *refs):
    if use_domain:
        (title_ref, dom_ref,
         w1a_ref, w1b_ref, b1_ref,
         w2_ref, b2_ref,
         w3_ref, b3_ref,
         w4t_ref, b4_ref,
         o_ref) = refs
    else:
        (title_ref,
         w1a_ref, b1_ref,
         w2_ref, b2_ref,
         w3_ref, b3_ref,
         w4t_ref, b4_ref,
         o_ref) = refs

    title = title_ref[...]                                             # (TB, 100)

    # fc1 on the split operands == concat([title, dom]) @ w1
    h1 = jnp.dot(title, w1a_ref[...], preferred_element_type=jnp.float32)
    if use_domain:
        h1 = h1 + jnp.dot(dom_ref[...], w1b_ref[...],
                          preferred_element_type=jnp.float32)
    h1 = jnp.maximum(h1 + b1_ref[...], 0.0)                            # (TB, 64)

    h2 = jnp.maximum(
        jnp.dot(h1, w2_ref[...], preferred_element_type=jnp.float32) + b2_ref[...],
        0.0)                                                           # (TB, 32)
    h3 = jnp.maximum(
        jnp.dot(h2, w3_ref[...], preferred_element_type=jnp.float32) + b3_ref[...],
        0.0)                                                           # (TB, 16)

    # fc4 (16 -> 1) as a VPU multiply + cross-lane reduction; avoids an N=1 MXU op.
    out = jnp.sum(h3 * w4t_ref[...], axis=-1, keepdims=True) + b4_ref[...]
    o_ref[...] = out.astype(o_ref.dtype)                               # (TB, 1)


def enhanced_regressor_forward(title_embedding, params, domain_id=None,
                               block_rows=1024):
    """Forward pass matching EnhancedRegressor.forward."""
    B, emb_dim = title_embedding.shape
    dom_dim = params["domain_embedding"].shape[1]
    use_domain = domain_id is not None

    title_embedding = title_embedding.astype(jnp.float32)

    # TODO(synk): domain-embedding gather stays in XLA (tiny: B x 16 f32); it could
    # be moved in-kernel with PrefetchScalarGridSpec + pl.Element row gather.
    if use_domain:
        domain_emb = jnp.take(params["domain_embedding"], domain_id,
                              axis=0).astype(jnp.float32)

    # Split w1 so the (B, 116) concat never materializes in HBM.
    w1a = params["w1"][:emb_dim]          # (100, 64)
    w1b = params["w1"][emb_dim:]          # (16, 64)
    w4t = params["w4"].T                  # (1, 16)

    # Row tile: large (up to block_rows) for throughput, rounded to a multiple of 8.
    tb = min(block_rows, _round_up(B, 8))
    tb = _round_up(tb, 8)
    B_pad = _round_up(B, tb)
    if B_pad != B:
        pad = B_pad - B
        title_embedding = jnp.pad(title_embedding, ((0, pad), (0, 0)))
        if use_domain:
            domain_emb = jnp.pad(domain_emb, ((0, pad), (0, 0)))

    grid = (pl.cdiv(B_pad, tb),)

    row2d = lambda shape: pl.BlockSpec(shape, lambda i: (i, 0))      # streamed tiles
    resident = lambda shape: pl.BlockSpec(shape, lambda i: (0, 0))   # VMEM-resident

    in_specs = [row2d((tb, emb_dim))]
    operands = [title_embedding]
    if use_domain:
        in_specs.append(row2d((tb, dom_dim)))
        operands.append(domain_emb)

    in_specs.append(resident(w1a.shape))
    operands.append(w1a)
    if use_domain:
        in_specs.append(resident(w1b.shape))
        operands.append(w1b)

    for name in ("b1", "w2", "b2", "w3", "b3"):
        in_specs.append(resident(params[name].shape))
        operands.append(params[name])
    in_specs.append(resident(w4t.shape))
    operands.append(w4t)
    in_specs.append(resident(params["b4"].shape))
    operands.append(params["b4"])

    out_spec = pl.BlockSpec((tb, 1), lambda i: (i, 0))

    param_elems = sum(int(op.size) for op in operands[1 + int(use_domain):])
    flops = 2 * B_pad * (emb_dim * 64 + (dom_dim * 64 if use_domain else 0)
                         + 64 * 32 + 32 * 16 + 16)
    bytes_accessed = 4 * (B_pad * (emb_dim + (dom_dim if use_domain else 0) + 1)
                          + param_elems)

    out = pl.pallas_call(
        functools.partial(_mlp_kernel, use_domain),
        out_shape=jax.ShapeDtypeStruct((B_pad, 1), jnp.float32),
        grid=grid,
        in_specs=in_specs,
        out_specs=out_spec,
        compiler_params=pltpu.CompilerParams(
            dimension_semantics=("parallel",)),
        cost_estimate=pl.CostEstimate(
            flops=flops, transcendentals=0, bytes_accessed=bytes_accessed),
    )(*operands)

    return out[:B]


def init_params(key, embedding_dim=100, domain_embedding_dim=16, domain_vocab_size=1000):
    """Deterministic init mirroring the PyTorch module's parameter shapes."""
    combined_dim = embedding_dim + domain_embedding_dim
    dims = [(combined_dim, 64), (64, 32), (32, 16), (16, 1)]
    keys = jax.random.split(key, 1 + 2 * len(dims))

    params = {
        # nn.Embedding default init: N(0, 1)
        "domain_embedding": jax.random.normal(
            keys[0], (domain_vocab_size, domain_embedding_dim), dtype=jnp.float32),
    }
    for i, (fan_in, fan_out) in enumerate(dims, start=1):
        bound = 1.0 / (fan_in ** 0.5)
        params[f"w{i}"] = jax.random.uniform(
            keys[2 * i - 1], (fan_in, fan_out), minval=-bound, maxval=bound,
            dtype=jnp.float32)
        params[f"b{i}"] = jax.random.uniform(
            keys[2 * i], (1, fan_out), minval=-bound, maxval=bound,
            dtype=jnp.float32)
    return params


def _reference_forward(title_embedding, params, domain_id=None):
    """Pure-JAX reference for correctness check."""
    B = title_embedding.shape[0]
    if domain_id is not None:
        dom = jnp.take(params["domain_embedding"], domain_id, axis=0)
    else:
        dom = jnp.zeros((B, params["domain_embedding"].shape[1]), title_embedding.dtype)
    x = jnp.concatenate([title_embedding, dom], axis=1)
    x = jnp.maximum(x @ params["w1"] + params["b1"], 0.0)
    x = jnp.maximum(x @ params["w2"] + params["b2"], 0.0)
    x = jnp.maximum(x @ params["w3"] + params["b3"], 0.0)
    return x @ params["w4"] + params["b4"]


if __name__ == "__main__":
    key = jax.random.PRNGKey(0)
    k_params, k_title, k_dom, k_title2, k_dom2 = jax.random.split(key, 5)

    B = 8
    EMB = 100
    DOM_EMB = 16
    VOCAB = 1000

    params = init_params(k_params, EMB, DOM_EMB, VOCAB)
    title_embedding = jax.random.normal(k_title, (B, EMB), dtype=jnp.float32)
    domain_id = jax.random.randint(k_dom, (B,), 0, VOCAB, dtype=jnp.int32)

    # 1) With domain_id provided (single-tile path).
    out = enhanced_regressor_forward(title_embedding, params, domain_id)
    out = jax.block_until_ready(out)
    ref = _reference_forward(title_embedding, params, domain_id)
    assert out.shape == (B, 1)
    assert jnp.allclose(out, ref, atol=1e-5, rtol=1e-5)

    # 2) domain_id=None branch (domain operand statically dropped from the kernel).
    out_none = enhanced_regressor_forward(title_embedding, params, None)
    out_none = jax.block_until_ready(out_none)
    ref_none = _reference_forward(title_embedding, params, None)
    assert jnp.allclose(out_none, ref_none, atol=1e-5, rtol=1e-5)

    # 3) Ragged multi-tile path: B=20 with an 8-row tile -> padded to 24, grid=(3,).
    B2 = 20
    title2 = jax.random.normal(k_title2, (B2, EMB), dtype=jnp.float32)
    dom_id2 = jax.random.randint(k_dom2, (B2,), 0, VOCAB, dtype=jnp.int32)
    out2 = enhanced_regressor_forward(title2, params, dom_id2, block_rows=8)
    out2 = jax.block_until_ready(out2)
    ref2 = _reference_forward(title2, params, dom_id2)
    assert out2.shape == (B2, 1)
    assert jnp.allclose(out2, ref2, atol=1e-5, rtol=1e-5)

    print("KERNEL_OK")
</pallas_src>

<mosaic_0001>
module attributes {stable_mosaic.version = 11 : i64} {
  func.func @_mlp_kernel(%arg0: i32, %arg1: memref<8x100xf32, #tpu.memory_space<vmem>>, %arg2: memref<8x16xf32, #tpu.memory_space<vmem>>, %arg3: memref<100x64xf32, #tpu.memory_space<vmem>>, %arg4: memref<16x64xf32, #tpu.memory_space<vmem>>, %arg5: memref<1x64xf32, #tpu.memory_space<vmem>>, %arg6: memref<64x32xf32, #tpu.memory_space<vmem>>, %arg7: memref<1x32xf32, #tpu.memory_space<vmem>>, %arg8: memref<32x16xf32, #tpu.memory_space<vmem>>, %arg9: memref<1x16xf32, #tpu.memory_space<vmem>>, %arg10: memref<1x16xf32, #tpu.memory_space<vmem>>, %arg11: memref<1x1xf32, #tpu.memory_space<vmem>>, %arg12: memref<8x1xf32, #tpu.memory_space<vmem>>) attributes {dimension_semantics = [#tpu.dimension_semantics<parallel>], iteration_bounds = array<i64: 1>, scalar_prefetch = 0 : i64, scratch_operands = 0 : i64, tpu.core_type = #tpu.core_type<tc>, window_params = [{transform_indices = @transform_0, window_bounds = array<i64: 8, 100>}, {transform_indices = @transform_1, window_bounds = array<i64: 8, 16>}, {pipeline_mode = #tpu.pipeline_mode<synchronous>, transform_indices = @transform_2, window_bounds = array<i64: 100, 64>}, {pipeline_mode = #tpu.pipeline_mode<synchronous>, transform_indices = @transform_3, window_bounds = array<i64: 16, 64>}, {pipeline_mode = #tpu.pipeline_mode<synchronous>, transform_indices = @transform_4, window_bounds = array<i64: 1, 64>}, {pipeline_mode = #tpu.pipeline_mode<synchronous>, transform_indices = @transform_5, window_bounds = array<i64: 64, 32>}, {pipeline_mode = #tpu.pipeline_mode<synchronous>, transform_indices = @transform_6, window_bounds = array<i64: 1, 32>}, {pipeline_mode = #tpu.pipeline_mode<synchronous>, transform_indices = @transform_7, window_bounds = array<i64: 32, 16>}, {pipeline_mode = #tpu.pipeline_mode<synchronous>, transform_indices = @transform_8, window_bounds = array<i64: 1, 16>}, {pipeline_mode = #tpu.pipeline_mode<synchronous>, transform_indices = @transform_9, window_bounds = array<i64: 1, 16>}, {pipeline_mode = #tpu.pipeline_mode<synchronous>, transform_indices = @transform_10, window_bounds = array<i64: 1, 1>}, {transform_indices = @transform_11, window_bounds = array<i64: 8, 1>}]} {
    %c0 = arith.constant 0 : index
    %c0_0 = arith.constant 0 : index
    %0 = vector.load %arg1[%c0, %c0_0] : memref<8x100xf32, #tpu.memory_space<vmem>>, vector<8x100xf32>
    %c0_1 = arith.constant 0 : index
    %c0_2 = arith.constant 0 : index
    %1 = vector.load %arg3[%c0_1, %c0_2] : memref<100x64xf32, #tpu.memory_space<vmem>>, vector<100x64xf32>
    %cst = arith.constant dense<0.000000e+00> : vector<8x64xf32>
    %2 = tpu.matmul %0, %1, %cst {dimension_numbers = #tpu.dot_dimension_numbers<[1], [0], [0], [1], [0, 0, 1, 1], [], []>} : vector<8x100xf32>, vector<100x64xf32>, vector<8x64xf32> -> vector<8x64xf32>
    %c0_3 = arith.constant 0 : index
    %c0_4 = arith.constant 0 : index
    %3 = vector.load %arg2[%c0_3, %c0_4] : memref<8x16xf32, #tpu.memory_space<vmem>>, vector<8x16xf32>
    %c0_5 = arith.constant 0 : index
    %c0_6 = arith.constant 0 : index
    %4 = vector.load %arg4[%c0_5, %c0_6] : memref<16x64xf32, #tpu.memory_space<vmem>>, vector<16x64xf32>
    %cst_7 = arith.constant dense<0.000000e+00> : vector<8x64xf32>
    %5 = tpu.matmul %3, %4, %cst_7 {dimension_numbers = #tpu.dot_dimension_numbers<[1], [0], [0], [1], [0, 0, 1, 1], [], []>} : vector<8x16xf32>, vector<16x64xf32>, vector<8x64xf32> -> vector<8x64xf32>
    %6 = arith.addf %2, %5 : vector<8x64xf32>
    %c0_8 = arith.constant 0 : index
    %c0_9 = arith.constant 0 : index
    %7 = vector.load %arg5[%c0_8, %c0_9] : memref<1x64xf32, #tpu.memory_space<vmem>>, vector<1x64xf32>
    %8 = vector.broadcast %7 : vector<1x64xf32> to vector<8x64xf32>
    %9 = arith.addf %6, %8 : vector<8x64xf32>
    %cst_10 = arith.constant 0.000000e+00 : f32
    %10 = vector.broadcast %cst_10 : f32 to vector<8x64xf32>
    %11 = arith.maximumf %9, %10 : vector<8x64xf32>
    %c0_11 = arith.constant 0 : index
    %c0_12 = arith.constant 0 : index
    %12 = vector.load %arg6[%c0_11, %c0_12] : memref<64x32xf32, #tpu.memory_space<vmem>>, vector<64x32xf32>
    %cst_13 = arith.constant dense<0.000000e+00> : vector<8x32xf32>
    %13 = tpu.matmul %11, %12, %cst_13 {dimension_numbers = #tpu.dot_dimension_numbers<[1], [0], [0], [1], [0, 0, 1, 1], [], []>} : vector<8x64xf32>, vector<64x32xf32>, vector<8x32xf32> -> vector<8x32xf32>
    %c0_14 = arith.constant 0 : index
    %c0_15 = arith.constant 0 : index
    %14 = vector.load %arg7[%c0_14, %c0_15] : memref<1x32xf32, #tpu.memory_space<vmem>>, vector<1x32xf32>
    %15 = vector.broadcast %14 : vector<1x32xf32> to vector<8x32xf32>
    %16 = arith.addf %13, %15 : vector<8x32xf32>
    %cst_16 = arith.constant 0.000000e+00 : f32
    %17 = vector.broadcast %cst_16 : f32 to vector<8x32xf32>
    %18 = arith.maximumf %16, %17 : vector<8x32xf32>
    %c0_17 = arith.constant 0 : index
    %c0_18 = arith.constant 0 : index
    %19 = vector.load %arg8[%c0_17, %c0_18] : memref<32x16xf32, #tpu.memory_space<vmem>>, vector<32x16xf32>
    %cst_19 = arith.constant dense<0.000000e+00> : vector<8x16xf32>
    %20 = tpu.matmul %18, %19, %cst_19 {dimension_numbers = #tpu.dot_dimension_numbers<[1], [0], [0], [1], [0, 0, 1, 1], [], []>} : vector<8x32xf32>, vector<32x16xf32>, vector<8x16xf32> -> vector<8x16xf32>
    %c0_20 = arith.constant 0 : index
    %c0_21 = arith.constant 0 : index
    %21 = vector.load %arg9[%c0_20, %c0_21] : memref<1x16xf32, #tpu.memory_space<vmem>>, vector<1x16xf32>
    %22 = vector.broadcast %21 : vector<1x16xf32> to vector<8x16xf32>
    %23 = arith.addf %20, %22 : vector<8x16xf32>
    %cst_22 = arith.constant 0.000000e+00 : f32
    %24 = vector.broadcast %cst_22 : f32 to vector<8x16xf32>
    %25 = arith.maximumf %23, %24 : vector<8x16xf32>
    %c0_23 = arith.constant 0 : index
    %c0_24 = arith.constant 0 : index
    %26 = vector.load %arg10[%c0_23, %c0_24] : memref<1x16xf32, #tpu.memory_space<vmem>>, vector<1x16xf32>
    %27 = vector.broadcast %26 : vector<1x16xf32> to vector<8x16xf32>
    %28 = arith.mulf %25, %27 : vector<8x16xf32>
    %cst_25 = arith.constant dense<0.000000e+00> : vector<8xf32>
    %29 = vector.multi_reduction <add>, %28, %cst_25 [1] : vector<8x16xf32> to vector<8xf32>
    %30 = vector.shape_cast %29 : vector<8xf32> to vector<8x1xf32>
    %c0_26 = arith.constant 0 : index
    %c0_27 = arith.constant 0 : index
    %31 = vector.load %arg11[%c0_26, %c0_27] : memref<1x1xf32, #tpu.memory_space<vmem>>, vector<1x1xf32>
    %32 = vector.broadcast %31 : vector<1x1xf32> to vector<8x1xf32>
    %33 = arith.addf %30, %32 : vector<8x1xf32>
    %c0_28 = arith.constant 0 : index
    %c0_29 = arith.constant 0 : index
    %34 = vector.load %arg12[%c0_28, %c0_29] : memref<8x1xf32, #tpu.memory_space<vmem>>, vector<8x1xf32>
    tpu.vector_store %arg12[%c0_28, %c0_29], %33 {strides = array<i32>} : memref<8x1xf32, #tpu.memory_space<vmem>>, vector<8x1xf32>,
    return
  }
  func.func @transform_0(%arg0: i32) -> (i32, i32) {
    %c0_i32 = arith.constant 0 : i32
    %c0_i32_0 = arith.constant 0 : i32
    return %arg0, %c0_i32 : i32, i32
  }
  func.func @transform_1(%arg0: i32) -> (i32, i32) {
    %c0_i32 = arith.constant 0 : i32
    %c0_i32_0 = arith.constant 0 : i32
    return %arg0, %c0_i32 : i32, i32
  }
  func.func @transform_2(%arg0: i32) -> (i32, i32) {
    %c0_i32 = arith.constant 0 : i32
    %c0_i32_0 = arith.constant 0 : i32
    %c0_i32_1 = arith.constant 0 : i32
    return %c0_i32, %c0_i32_0 : i32, i32
  }
  func.func @transform_3(%arg0: i32) -> (i32, i32) {
    %c0_i32 = arith.constant 0 : i32
    %c0_i32_0 = arith.constant 0 : i32
    %c0_i32_1 = arith.constant 0 : i32
    return %c0_i32, %c0_i32_0 : i32, i32
  }
  func.func @transform_4(%arg0: i32) -> (i32, i32) {
    %c0_i32 = arith.constant 0 : i32
    %c0_i32_0 = arith.constant 0 : i32
    %c0_i32_1 = arith.constant 0 : i32
    return %c0_i32, %c0_i32_0 : i32, i32
  }
  func.func @transform_5(%arg0: i32) -> (i32, i32) {
    %c0_i32 = arith.constant 0 : i32
    %c0_i32_0 = arith.constant 0 : i32
    %c0_i32_1 = arith.constant 0 : i32
    return %c0_i32, %c0_i32_0 : i32, i32
  }
  func.func @transform_6(%arg0: i32) -> (i32, i32) {
    %c0_i32 = arith.constant 0 : i32
    %c0_i32_0 = arith.constant 0 : i32
    %c0_i32_1 = arith.constant 0 : i32
    return %c0_i32, %c0_i32_0 : i32, i32
  }
  func.func @transform_7(%arg0: i32) -> (i32, i32) {
    %c0_i32 = arith.constant 0 : i32
    %c0_i32_0 = arith.constant 0 : i32
    %c0_i32_1 = arith.constant 0 : i32
    return %c0_i32, %c0_i32_0 : i32, i32
  }
  func.func @transform_8(%arg0: i32) -> (i32, i32) {
    %c0_i32 = arith.constant 0 : i32
    %c0_i32_0 = arith.constant 0 : i32
    %c0_i32_1 = arith.constant 0 : i32
    return %c0_i32, %c0_i32_0 : i32, i32
  }
  func.func @transform_9(%arg0: i32) -> (i32, i32) {
    %c0_i32 = arith.constant 0 : i32
    %c0_i32_0 = arith.constant 0 : i32
    %c0_i32_1 = arith.constant 0 : i32
    return %c0_i32, %c0_i32_0 : i32, i32
  }
  func.func @transform_10(%arg0: i32) -> (i32, i32) {
    %c0_i32 = arith.constant 0 : i32
    %c0_i32_0 = arith.constant 0 : i32
    %c0_i32_1 = arith.constant 0 : i32
    return %c0_i32, %c0_i32_0 : i32, i32
  }
  func.func @transform_11(%arg0: i32) -> (i32, i32) {
    %c0_i32 = arith.constant 0 : i32
    %c0_i32_0 = arith.constant 0 : i32
    return %arg0, %c0_i32 : i32, i32
  }
}

</mosaic_0001>

<llo_original>
// kernel: tpu_custom_call.1
$region0: #{tpu_custom_call.1}
  #allocation0 [shape = 'u32[]', space=smem, size = 0x4, offset = 0x4, fixed_abs, tag = 'smem constant byte address 0x4 - core index']
  #allocation1 [shape = 'u32[72,128]{1,0:T(1,128)}', space=vmem, size = 0x9000, scoped, tag = 'internal scratch']
  #allocation2 [shape = 'f32[1,1]{1,0:T(1,128)S(1)}', space=vmem, size = 0x200, scoped, tag = 'scoped memory for tpu_custom_call.1']
  %s0 = inlined_call_operand.vmem [shape: f32[8,100], index: 0, kind: input, shape index: {}]
  %s1 = inlined_call_operand.vmem [shape: f32[8,16], index: 1, kind: input, shape index: {}]
  %s2 = inlined_call_operand.vmem [shape: f32[100,64], index: 2, kind: input, shape index: {}]
  %s3 = inlined_call_operand.vmem [shape: f32[16,64], index: 3, kind: input, shape index: {}]
  %s4 = inlined_call_operand.vmem [shape: f32[1,64], index: 4, kind: input, shape index: {}]
  %s5 = inlined_call_operand.vmem [shape: f32[64,32], index: 5, kind: input, shape index: {}]
  %s6 = inlined_call_operand.vmem [shape: f32[1,32], index: 6, kind: input, shape index: {}]
  %s7 = inlined_call_operand.vmem [shape: f32[32,16], index: 7, kind: input, shape index: {}]
  %s8 = inlined_call_operand.vmem [shape: f32[1,16], index: 8, kind: input, shape index: {}]
  %s9 = inlined_call_operand.vmem [shape: f32[1,16], index: 9, kind: input, shape index: {}]
  %s10 = inlined_call_operand.<no memory space> [shape: f32[1,1], index: 10, kind: input, shape index: {}]
  %s11 = inlined_call_operand.vmem [shape: f32[8,1], index: 11, kind: output, shape index: {}]
  %s12 = sld [smem:[#allocation0]]
  $region54: #{tpu_custom_call.1} parent=0
    _
  %s14 = ssub.s32 1, %s12
  %s15 = scalar_select 0, %s14, %s12
  %v16 = vstv %s10
  %17 = vst [vmem:[#allocation2] sm:$0x1] %v16
  // Predicated region
  $region2: #{tpu_custom_call.1} parent=0 // pred_check
    _
  $region3: #{tpu_custom_call.1} parent=0 // pred_check_branch
    %19 = sbr.rel (0) target = $region5
  $region4: #{tpu_custom_call.1} parent=0 // pred_region
    _
  $region5: #{tpu_custom_call.1} parent=0 // pred_fallthru
    _
  // Predicated region
  $region6: #{tpu_custom_call.1} parent=0 // pred_check
    _
  $region7: #{tpu_custom_call.1} parent=0 // pred_check_branch
    %21 = sbr.rel (0) target = $region9
  $region8: #{tpu_custom_call.1} parent=0 // pred_region
    _
  $region9: #{tpu_custom_call.1} parent=0 // pred_fallthru
    _
  // Predicated region
  $region10: #{tpu_custom_call.1} parent=0 // pred_check
    _
  $region11: #{tpu_custom_call.1} parent=0 // pred_check_branch
    %23 = sbr.rel (0) target = $region13
  $region12: #{tpu_custom_call.1} parent=0 // pred_region
    _
  $region13: #{tpu_custom_call.1} parent=0 // pred_fallthru
    _
  // Predicated region
  $region14: #{tpu_custom_call.1} parent=0 // pred_check
    _
  $region15: #{tpu_custom_call.1} parent=0 // pred_check_branch
    %25 = sbr.rel (0) target = $region17
  $region16: #{tpu_custom_call.1} parent=0 // pred_region
    _
  $region17: #{tpu_custom_call.1} parent=0 // pred_fallthru
    _
  // Predicated region
  $region18: #{tpu_custom_call.1} parent=0 // pred_check
    _
  $region19: #{tpu_custom_call.1} parent=0 // pred_check_branch
    %27 = sbr.rel (0) target = $region21
  $region20: #{tpu_custom_call.1} parent=0 // pred_region
    _
  $region21: #{tpu_custom_call.1} parent=0 // pred_fallthru
    _
  // Predicated region
  $region22: #{tpu_custom_call.1} parent=0 // pred_check
    _
  $region23: #{tpu_custom_call.1} parent=0 // pred_check_branch
    %29 = sbr.rel (0) target = $region25
  $region24: #{tpu_custom_call.1} parent=0 // pred_region
    _
  $region25: #{tpu_custom_call.1} parent=0 // pred_fallthru
    _
  // Predicated region
  $region26: #{tpu_custom_call.1} parent=0 // pred_check
    _
  $region27: #{tpu_custom_call.1} parent=0 // pred_check_branch
    %31 = sbr.rel (0) target = $region29
  $region28: #{tpu_custom_call.1} parent=0 // pred_region
    _
  $region29: #{tpu_custom_call.1} parent=0 // pred_fallthru
    _
  // Predicated region
  $region30: #{tpu_custom_call.1} parent=0 // pred_check
    _
  $region31: #{tpu_custom_call.1} parent=0 // pred_check_branch
    %33 = sbr.rel (0) target = $region33
  $region32: #{tpu_custom_call.1} parent=0 // pred_region
    _
  $region33: #{tpu_custom_call.1} parent=0 // pred_fallthru
    _
  // Predicated region
  $region34: #{tpu_custom_call.1} parent=0 // pred_check
    _
  $region35: #{tpu_custom_call.1} parent=0 // pred_check_branch
    %35 = sbr.rel (0) target = $region37
  $region36: #{tpu_custom_call.1} parent=0 // pred_region
    _
  $region37: #{tpu_custom_call.1} parent=0 // pred_fallthru
    _
  // Predicated region
  $region38: #{tpu_custom_call.1} parent=0 // pred_check
    _
  $region39: #{tpu_custom_call.1} parent=0 // pred_check_branch
    %37 = sbr.rel (0) target = $region41
  $region40: #{tpu_custom_call.1} parent=0 // pred_region
    _
  $region41: #{tpu_custom_call.1} parent=0 // pred_fallthru
    _
  // Predicated region
  $region42: #{tpu_custom_call.1} parent=0 // pred_check
    _
  $region43: #{tpu_custom_call.1} parent=0 // pred_check_branch
    %39 = sbr.rel (0) target = $region45
  $region44: #{tpu_custom_call.1} parent=0 // pred_region
    _
  $region45: #{tpu_custom_call.1} parent=0 // pred_fallthru
    _
  %v40 = vld [vmem:[%s0] sm:$0xff]
  %v41 = vld [vmem:[%s2] sm:$0xff]
  %v42 = vld [vmem:[%s2 + $0x8] sm:$0xff]
  %v43 = vld [vmem:[%s2 + $0x10] sm:$0xff]
  %v44 = vld [vmem:[%s2 + $0x18] sm:$0xff]
  %v45 = vld [vmem:[%s2 + $0x20] sm:$0xff]
  %v46 = vld [vmem:[%s2 + $0x28] sm:$0xff]
  %v47 = vld [vmem:[%s2 + $0x30] sm:$0xff]
  %v48 = vld [vmem:[%s2 + $0x38] sm:$0xff]
  %v49 = vld [vmem:[%s2 + $0x40] sm:$0xff]
  %v50 = vld [vmem:[%s2 + $0x48] sm:$0xff]
  %v51 = vld [vmem:[%s2 + $0x50] sm:$0xff]
  %v52 = vld [vmem:[%s2 + $0x58] sm:$0xff]
  %v53 = vld [vmem:[%s2 + $0x60] sm:$0xf]
  %v54 = vld [vmem:[%s1] sm:$0xff]
  %v55 = vld [vmem:[%s3] sm:$0xff]
  %v56 = vld [vmem:[%s3 + $0x8] sm:$0xff]
  %vm57 = vcmask 130048
  %v59 = vsel %vm57, %v54, 0
  %61 = vmatpush.msra.mxu0 0.0
  %62 = vmatpush.msra.mxu0 0.0
  %63 = vmatpush.msra.mxu0 0.0
  %64 = vmatpush.msra.mxu0 0.0
  %65 = vmatpush.msra.mxu0 0.0
  %66 = vmatpush.msra.mxu0 0.0
  %67 = vmatpush.msra.mxu0 0.0
  %68 = vmatpush.msra.mxu0 0.0
  %69 = vmatpush.msra.mxu0 0.0
  %70 = vmatpush.msra.mxu0 0.0
  %71 = vmatpush.msra.mxu0 0.0
  %72 = vmatpush.msra.mxu0 0.0
  %73 = vmatpush.msra.mxu0 0.0
  %74 = vmatpush.msra.mxu0 0.0
  %75 = vmatpush.msra.mxu0 %v56
  %76 = vmatpush.msra.mxu0 %v55
  %77 = vmatmul.f32.gmra.mxu0 %v59
  %v78 = vpop.f32.mrf.mxu0
  %v79 = vadd.f32 0.0, %v78
  %80 = vdwg.mxu0
  %vm81 = vcmask 818176
  %v83 = vsel %vm81, %v40, 0
  %vm85 = vcmask 1043456
  %v87 = vsel %vm85, %v53, 0
  %89 = vmatpush.msra.mxu0 0.0
  %90 = vmatpush.msra.mxu0 0.0
  %91 = vmatpush.msra.mxu0 0.0
  %92 = vmatpush.msra.mxu0 %v87
  %93 = vmatpush.msra.mxu0 %v52
  %94 = vmatpush.msra.mxu0 %v51
  %95 = vmatpush.msra.mxu0 %v50
  %96 = vmatpush.msra.mxu0 %v49
  %97 = vmatpush.msra.mxu0 %v48
  %98 = vmatpush.msra.mxu0 %v47
  %99 = vmatpush.msra.mxu0 %v46
  %100 = vmatpush.msra.mxu0 %v45
  %101 = vmatpush.msra.mxu0 %v44
  %102 = vmatpush.msra.mxu0 %v43
  %103 = vmatpush.msra.mxu0 %v42
  %104 = vmatpush.msra.mxu0 %v41
  %105 = vmatmul.f32.gmra.mxu0 %v83
  %v106 = vpop.f32.mrf.mxu0
  %v107 = vadd.f32 %v79, %v106
  %108 = vdwg.mxu0
  %v109 = vld [vmem:[%s4] sm:$0x1]
  %v111 = vperm.slane %v109, 0
  %v113 = vadd.f32 %v107, %v111
  %v114 = vmax.f32 %v113, 0.0
  %v115 = vld [vmem:[%s5] sm:$0xff]
  %v116 = vld [vmem:[%s5 + $0x8] sm:$0xff]
  %v117 = vld [vmem:[%s5 + $0x10] sm:$0xff]
  %v118 = vld [vmem:[%s5 + $0x18] sm:$0xff]
  %v119 = vld [vmem:[%s5 + $0x20] sm:$0xff]
  %v120 = vld [vmem:[%s5 + $0x28] sm:$0xff]
  %v121 = vld [vmem:[%s5 + $0x30] sm:$0xff]
  %v122 = vld [vmem:[%s5 + $0x38] sm:$0xff]
  %v123 = vld [vmem:[%s6] sm:$0x1]
  %v125 = vperm.slane %v123, 0
  %vm127 = vcmask 523264
  %v129 = vsel %vm127, %v114, 0
  %131 = vmatpush.msra.mxu0 0.0
  %132 = vmatpush.msra.mxu0 0.0
  %133 = vmatpush.msra.mxu0 0.0
  %134 = vmatpush.msra.mxu0 0.0
  %135 = vmatpush.msra.mxu0 0.0
  %136 = vmatpush.msra.mxu0 0.0
  %137 = vmatpush.msra.mxu0 0.0
  %138 = vmatpush.msra.mxu0 0.0
  %139 = vmatpush.msra.mxu0 %v122
  %140 = vmatpush.msra.mxu0 %v121
  %141 = vmatpush.msra.mxu0 %v120
  %142 = vmatpush.msra.mxu0 %v119
  %143 = vmatpush.msra.mxu0 %v118
  %144 = vmatpush.msra.mxu0 %v117
  %145 = vmatpush.msra.mxu0 %v116
  %146 = vmatpush.msra.mxu0 %v115
  %147 = vmatmul.f32.gmra.mxu0 %v129
  %v148 = vpop.f32.mrf.mxu0
  %v149 = vadd.f32 %v125, %v148
  %150 = vdwg.mxu0
  %v151 = vmax.f32 %v149, 0.0
  %v152 = vld [vmem:[%s7] sm:$0xff]
  %v153 = vld [vmem:[%s7 + $0x8] sm:$0xff]
  %v154 = vld [vmem:[%s7 + $0x10] sm:$0xff]
  %v155 = vld [vmem:[%s7 + $0x18] sm:$0xff]
  %v156 = vld [vmem:[%s8] sm:$0x1]
  %v158 = vperm.slane %v156, 0
  %vm160 = vcmask 261120
  %v162 = vsel %vm160, %v151, 0
  %164 = vmatpush.msra.mxu0 0.0
  %165 = vmatpush.msra.mxu0 0.0
  %166 = vmatpush.msra.mxu0 0.0
  %167 = vmatpush.msra.mxu0 0.0
  %168 = vmatpush.msra.mxu0 0.0
  %169 = vmatpush.msra.mxu0 0.0
  %170 = vmatpush.msra.mxu0 0.0
  %171 = vmatpush.msra.mxu0 0.0
  %172 = vmatpush.msra.mxu0 0.0
  %173 = vmatpush.msra.mxu0 0.0
  %174 = vmatpush.msra.mxu0 0.0
  %175 = vmatpush.msra.mxu0 0.0
  %176 = vmatpush.msra.mxu0 %v155
  %177 = vmatpush.msra.mxu0 %v154
  %178 = vmatpush.msra.mxu0 %v153
  %179 = vmatpush.msra.mxu0 %v152
  %180 = vmatmul.f32.gmra.mxu0 %v162
  %v181 = vpop.f32.mrf.mxu0
  %v182 = vadd.f32 %v158, %v181
  %183 = vdwg.mxu0
  %v184 = vmax.f32 %v182, 0.0
  %v185 = vld [vmem:[%s9] sm:$0x1]
  %v187 = vperm.slane %v185, 0
  %v189 = vmul.f32 %v184, %v187
  %v190 = vsel %vm57, %v189, 0.0
  %191 = vadd.xlane.f32.xlu0 %v190
  %v192 = vpop.xlane.xlu0 %191
  %v193 = vld [vmem:[#allocation2] sm:$0x1]
  %v195 = vperm.slane %v193, 0
  %v197 = vadd.f32 %v192, %v195
  %vm198 = vcmask 7168
  %199 = vst.msk [vmem:[%s11] sm:$0xff] %vm198, %v197
  // Predicated region
  $region46: #{tpu_custom_call.1} parent=0 // pred_check
    _
  $region47: #{tpu_custom_call.1} parent=0 // pred_check_branch
    %201 = sbr.rel (0) target = $region49
  $region48: #{tpu_custom_call.1} parent=0 // pred_region
    _
  $region49: #{tpu_custom_call.1} parent=0 // pred_fallthru
    _
  // Predicated region
  $region50: #{tpu_custom_call.1} parent=0 // pred_check
    _
  $region51: #{tpu_custom_call.1} parent=0 // pred_check_branch
    %203 = sbr.rel (0) target = $region53
  $region52: #{tpu_custom_call.1} parent=0 // pred_region
    _
  $region53: #{tpu_custom_call.1} parent=0 // pred_fallthru
    _

</llo_original>
